<compile_context>
chip_gen: v7x
topology: tpu7x:2x2x1
jax: 0.10.0
libtpu: 0.0.40
codegen_flags: <defaults>
</compile_context>

<pallas_src>
import functools

import jax
import jax.numpy as jnp
from jax.experimental import pallas as pl
from jax.experimental.pallas import tpu as pltpu


def _round_up(x, m):
    return (x + m - 1) // m * m


def _vmem_limit_bytes():
    # ~7/8 of physical VMEM: 112 MiB on v5e/v6e, 56 MiB on v7x.  Safe fallback.
    try:
        cap = pltpu.get_tpu_info().vmem_capacity_bytes
        return min(int(cap) * 7 // 8, 112 * 1024 * 1024)
    except Exception:
        return 32 * 1024 * 1024


# ----------------------------- Pallas kernels -------------------------------

def _conv_relu_affine_kernel(xc_ref, xn_ref, w_ref, scale_ref, shift_ref, o_ref,
                             *, k, tile_t):
    # Halo window = current time tile + first (k-1) rows of the next tile.
    xw = jnp.concatenate([xc_ref[...], xn_ref[...]], axis=0)   # (2*tile_t, C_in) bf16
    acc = jnp.zeros((tile_t, o_ref.shape[-1]), jnp.float32)
    for j in range(k):                                          # static, small k
        acc += jnp.dot(xw[j:j + tile_t, :], w_ref[j],
                       preferred_element_type=jnp.float32)
    y = jnp.maximum(acc, 0.0)                                   # ReLU
    # Per-channel affine (eval-folded BN, or training batch-stat BN) in f32,
    # cast to bf16 only on the lane-dense store.
    o_ref[...] = (y * scale_ref[...] + shift_ref[...]).astype(o_ref.dtype)


def _conv_relu_stats_kernel(xc_ref, xn_ref, w_ref, stats_ref, *, k, tile_t, t_out):
    # Training pass 1: conv + ReLU, emit per-tile (sum, sumsq) partials only.
    xw = jnp.concatenate([xc_ref[...], xn_ref[...]], axis=0)
    acc = jnp.zeros((tile_t, stats_ref.shape[-1]), jnp.float32)
    for j in range(k):
        acc += jnp.dot(xw[j:j + tile_t, :], w_ref[j],
                       preferred_element_type=jnp.float32)
    y = jnp.maximum(acc, 0.0)
    # Rows past the true T_out (tile-alignment padding) can see real right
    # context, so they are not guaranteed to be zero -> mask them out of the
    # batch statistics.
    rows = pl.program_id(1) * tile_t + jax.lax.broadcasted_iota(
        jnp.int32, (tile_t, 1), 0)
    y = jnp.where(rows < t_out, y, 0.0)
    stats_ref[...] = jnp.concatenate(
        [jnp.sum(y, axis=0, keepdims=True),
         jnp.sum(y * y, axis=0, keepdims=True)], axis=0)


# ------------------------------- parameters ---------------------------------

def init_params(key, c_in, c_out, kernel_size, eps=1e-5):
    k_w, k_g, k_b, k_m, k_v = jax.random.split(key, 5)
    s = 1.0 / jnp.sqrt(float(c_in * kernel_size))
    w = jax.random.uniform(k_w, (c_out, c_in, kernel_size), jnp.float32, -s, s)
    gamma = jax.random.uniform(k_g, (c_out,), jnp.float32, 0.5, 1.5)
    beta = 0.1 * jax.random.normal(k_b, (c_out,), jnp.float32)
    running_mean = 0.1 * jax.random.normal(k_m, (c_out,), jnp.float32)
    running_var = jax.random.uniform(k_v, (c_out,), jnp.float32, 0.5, 1.5)

    c_out_p = _round_up(c_out, 128)            # lane-dense output / weight width

    # PyTorch Conv1d weight (C_out, C_in, k) -> per-tap matmul slices
    # (k, C_in, C_out_p), bf16 for the MXU.
    w_taps = jnp.transpose(w, (2, 1, 0))
    w_taps = jnp.pad(w_taps, ((0, 0), (0, 0), (0, c_out_p - c_out)))

    def pad_row(v):
        return jnp.pad(v, (0, c_out_p - c_out)).reshape(1, c_out_p)

    eval_scale = gamma / jnp.sqrt(running_var + eps)
    eval_shift = beta - running_mean * eval_scale

    return {
        "w": w, "gamma": gamma, "beta": beta,
        "running_mean": running_mean, "running_var": running_var,
        "c_out": c_out, "c_out_p": c_out_p, "kernel_size": kernel_size, "eps": eps,
        "w_taps": w_taps.astype(jnp.bfloat16),
        "eval_scale": pad_row(eval_scale), "eval_shift": pad_row(eval_shift),
    }


# ------------------------------ forward pass ---------------------------------

def batch_norm_convolution(x_nct, params, *, padding, stride=1, training=True,
                           momentum=0.1, tile_t=512, channels_last=False,
                           return_running_stats=False):
    """x_nct: (N, C_in, T) (PyTorch Conv1d layout).

    Returns (N, C_out, T_out); with channels_last=True returns (N, T_out, C_out)
    and skips the trailing transpose (perf-review option for fused consumers).
    """
    if stride != 1:
        # TODO(synk): stride > 1 not implemented in the fused halo kernel
        # (Tacotron's BatchNormConvolution uses stride=1).
        raise NotImplementedError("fused kernel supports stride=1 only")
    if isinstance(padding, int):
        left = right = padding
    else:
        left, right = padding

    N, c_in, T = x_nct.shape
    k = params["kernel_size"]
    c_out, c_out_p = params["c_out"], params["c_out_p"]
    eps = params["eps"]
    w_taps = params["w_taps"]
    T_out = T + left + right - k + 1
    assert T_out > 0

    # Time tile: multiple of 16 (bf16 sublane packing), >= k so the halo always
    # fits inside the next tile.
    tm = max(_round_up(min(tile_t, T_out), 16), _round_up(k, 16))
    n_t = pl.cdiv(T_out, tm)
    T_x = (n_t + 1) * tm          # one extra zero tile so the "next" halo block exists

    # Channel-last + bf16 BEFORE padding; rows [left, left+T) hold the signal,
    # the rest is conv zero padding plus tile alignment.
    x_ntc = jnp.transpose(x_nct, (0, 2, 1)).astype(jnp.bfloat16)
    xp = jnp.pad(x_ntc, ((0, 0), (left, T_x - left - T), (0, 0)))

    grid = (N, n_t)
    x_cur = pl.BlockSpec((None, tm, c_in), lambda n, t: (n, t, 0))
    x_nxt = pl.BlockSpec((None, tm, c_in), lambda n, t: (n, t + 1, 0))
    w_spec = pl.BlockSpec((k, c_in, c_out_p), lambda n, t: (0, 0, 0))
    v_spec = pl.BlockSpec((1, c_out_p), lambda n, t: (0, 0))
    o_spec = pl.BlockSpec((None, tm, c_out_p), lambda n, t: (n, t, 0))
    cparams = pltpu.CompilerParams(
        dimension_semantics=("parallel", "parallel"),
        vmem_limit_bytes=_vmem_limit_bytes())

    if training:
        # Pass 1: per-tile partial (sum, sumsq) of y = relu(conv(x)).
        stats_kernel = functools.partial(_conv_relu_stats_kernel,
                                         k=k, tile_t=tm, t_out=T_out)
        stats = pl.pallas_call(
            stats_kernel,
            grid=grid,
            in_specs=[x_cur, x_nxt, w_spec],
            out_specs=pl.BlockSpec((None, None, 2, c_out_p),
                                   lambda n, t: (n, t, 0, 0)),
            out_shape=jax.ShapeDtypeStruct((N, n_t, 2, c_out_p), jnp.float32),
            compiler_params=cparams,
        )(xp, xp, w_taps)

        count = float(N * T_out)
        sums = jnp.sum(stats, axis=(0, 1))[:, :c_out]             # (2, c_out)
        mean = sums[0] / count
        var = jnp.maximum(sums[1] / count - mean * mean, 0.0)      # clamp: no rsqrt NaN
        scale = params["gamma"] * jax.lax.rsqrt(var + eps)
        shift = params["beta"] - mean * scale
        scale_p = jnp.pad(scale, (0, c_out_p - c_out)).reshape(1, c_out_p)
        shift_p = jnp.pad(shift, (0, c_out_p - c_out)).reshape(1, c_out_p)
    else:
        scale_p, shift_p = params["eval_scale"], params["eval_shift"]

    # Pass 2 (training) / the only pass (eval): fused conv + ReLU + affine.
    affine_kernel = functools.partial(_conv_relu_affine_kernel, k=k, tile_t=tm)
    out = pl.pallas_call(
        affine_kernel,
        grid=grid,
        in_specs=[x_cur, x_nxt, w_spec, v_spec, v_spec],
        out_specs=o_spec,
        out_shape=jax.ShapeDtypeStruct((N, n_t * tm, c_out_p), jnp.bfloat16),
        compiler_params=cparams,
    )(xp, xp, w_taps, scale_p, shift_p)

    out = out[:, :T_out, :c_out]
    if not channels_last:
        out = jnp.transpose(out, (0, 2, 1))        # PyTorch (N, C_out, T_out)

    if training and return_running_stats:
        unbiased = var * (count / max(count - 1.0, 1.0))
        new_rm = (1.0 - momentum) * params["running_mean"] + momentum * mean
        new_rv = (1.0 - momentum) * params["running_var"] + momentum * unbiased
        return out, (new_rm, new_rv)
    return out


# -------------------------- pure-JAX reference -------------------------------

def reference_forward(x_nct, params, *, padding, stride=1, training=True):
    """f32 reference with bf16-rounded matmul operands (matches the MXU path)."""
    if isinstance(padding, int):
        left = right = padding
    else:
        left, right = padding
    eps = params["eps"]
    xb = x_nct.astype(jnp.bfloat16).astype(jnp.float32)
    wb = params["w"].astype(jnp.bfloat16).astype(jnp.float32)
    xp = jnp.pad(xb, ((0, 0), (0, 0), (left, right)))
    y = jax.lax.conv_general_dilated(
        xp, wb, window_strides=(stride,), padding="VALID",
        dimension_numbers=("NCH", "OIH", "NCH"))
    y = jnp.maximum(y, 0.0)
    if training:
        mean = jnp.mean(y, axis=(0, 2))
        var = jnp.mean(jnp.square(y - mean[None, :, None]), axis=(0, 2))
    else:
        mean, var = params["running_mean"], params["running_var"]
    scale = params["gamma"] / jnp.sqrt(var + eps)
    shift = params["beta"] - mean * scale
    return y * scale[None, :, None] + shift[None, :, None]


# ---------------------------------- main -------------------------------------

if __name__ == "__main__":
    N, C_IN, C_OUT, T = 2, 32, 32, 16
    K, STRIDE = 5, 1
    PADDING = ((K - 1) // 2, K // 2)       # length-preserving, as in Tacotron CBHG
    T_OUT = T + sum(PADDING) - K + 1

    key = jax.random.PRNGKey(0)
    k_params, k_x = jax.random.split(key)
    params = init_params(k_params, C_IN, C_OUT, K)
    x = jax.random.normal(k_x, (N, C_IN, T), jnp.float32)

    # training mode (batch statistics) + running-stat momentum update
    out_tr, (new_rm, new_rv) = batch_norm_convolution(
        x, params, padding=PADDING, stride=STRIDE, training=True,
        return_running_stats=True)
    out_tr = jax.block_until_ready(out_tr)
    assert out_tr.shape == (N, C_OUT, T_OUT), out_tr.shape
    assert new_rm.shape == (C_OUT,) and new_rv.shape == (C_OUT,)
    assert bool(jnp.all(jnp.isfinite(out_tr.astype(jnp.float32))))
    assert bool(jnp.all(jnp.isfinite(new_rm))) and bool(jnp.all(jnp.isfinite(new_rv)))

    # eval mode (running statistics)
    out_ev = jax.block_until_ready(
        batch_norm_convolution(x, params, padding=PADDING, stride=STRIDE,
                               training=False))
    assert out_ev.shape == (N, C_OUT, T_OUT), out_ev.shape

    for out, training in ((out_tr, True), (out_ev, False)):
        ref = reference_forward(x, params, padding=PADDING, stride=STRIDE,
                                training=training)
        err = float(jnp.max(jnp.abs(out.astype(jnp.float32) - ref)))
        rel = err / (float(jnp.max(jnp.abs(ref))) + 1e-6)
        assert rel < 2e-2, f"training={training} max_abs_err={err} rel={rel}"

    print("KERNEL_OK")
</pallas_src>

<mosaic_0001>
module attributes {stable_mosaic.version = 11 : i64} {
  func.func @_conv_relu_stats_kernel(%arg0: i32, %arg1: i32, %arg2: memref<1x16x32xbf16, #tpu.memory_space<vmem>>, %arg3: memref<1x16x32xbf16, #tpu.memory_space<vmem>>, %arg4: memref<5x32x128xbf16, #tpu.memory_space<vmem>>, %arg5: memref<1x1x2x128xf32, #tpu.memory_space<vmem>>) attributes {dimension_semantics = [#tpu.dimension_semantics<parallel>, #tpu.dimension_semantics<parallel>], iteration_bounds = array<i64: 2, 1>, scalar_prefetch = 0 : i64, scratch_operands = 0 : i64, tpu.core_type = #tpu.core_type<tc>, window_params = [{transform_indices = @transform_0, window_bounds = array<i64: 1, 16, 32>}, {transform_indices = @transform_1, window_bounds = array<i64: 1, 16, 32>}, {pipeline_mode = #tpu.pipeline_mode<synchronous>, transform_indices = @transform_2, window_bounds = array<i64: 5, 32, 128>}, {transform_indices = @transform_3, window_bounds = array<i64: 1, 1, 2, 128>}]} {
    %c0 = arith.constant 0 : index
    %c0_0 = arith.constant 0 : index
    %c0_1 = arith.constant 0 : index
    %0 = vector.load %arg2[%c0, %c0_0, %c0_1] : memref<1x16x32xbf16, #tpu.memory_space<vmem>>, vector<1x16x32xbf16>
    %1 = vector.shape_cast %0 : vector<1x16x32xbf16> to vector<16x32xbf16>
    %c0_2 = arith.constant 0 : index
    %c0_3 = arith.constant 0 : index
    %c0_4 = arith.constant 0 : index
    %2 = vector.load %arg3[%c0_2, %c0_3, %c0_4] : memref<1x16x32xbf16, #tpu.memory_space<vmem>>, vector<1x16x32xbf16>
    %3 = vector.shape_cast %2 : vector<1x16x32xbf16> to vector<16x32xbf16>
    %4 = tpu.concatenate %1, %3 in 0 : vector<16x32xbf16>, vector<16x32xbf16> -> vector<32x32xbf16>
    %cst = arith.constant 0.000000e+00 : f32
    %5 = vector.broadcast %cst : f32 to vector<16x128xf32>
    %6 = vector.extract_strided_slice %4 {offsets = [0, 0], sizes = [16, 32], strides = [1, 1]} : vector<32x32xbf16> to vector<16x32xbf16>
    %c0_5 = arith.constant 0 : index
    %c0_6 = arith.constant 0 : index
    %c0_7 = arith.constant 0 : index
    %7 = vector.load %arg4[%c0_5, %c0_6, %c0_7] : memref<5x32x128xbf16, #tpu.memory_space<vmem>>, vector<1x32x128xbf16>
    %8 = vector.shape_cast %7 : vector<1x32x128xbf16> to vector<32x128xbf16>
    %cst_8 = arith.constant dense<0.000000e+00> : vector<16x128xf32>
    %9 = tpu.matmul %6, %8, %cst_8 {dimension_numbers = #tpu.dot_dimension_numbers<[1], [0], [0], [1], [0, 0, 1, 1], [], []>} : vector<16x32xbf16>, vector<32x128xbf16>, vector<16x128xf32> -> vector<16x128xf32>
    %10 = arith.addf %5, %9 : vector<16x128xf32>
    %11 = vector.extract_strided_slice %4 {offsets = [1, 0], sizes = [16, 32], strides = [1, 1]} : vector<32x32xbf16> to vector<16x32xbf16>
    %c1 = arith.constant 1 : index
    %c0_9 = arith.constant 0 : index
    %c0_10 = arith.constant 0 : index
    %12 = vector.load %arg4[%c1, %c0_9, %c0_10] : memref<5x32x128xbf16, #tpu.memory_space<vmem>>, vector<1x32x128xbf16>
    %13 = vector.shape_cast %12 : vector<1x32x128xbf16> to vector<32x128xbf16>
    %cst_11 = arith.constant dense<0.000000e+00> : vector<16x128xf32>
    %14 = tpu.matmul %11, %13, %cst_11 {dimension_numbers = #tpu.dot_dimension_numbers<[1], [0], [0], [1], [0, 0, 1, 1], [], []>} : vector<16x32xbf16>, vector<32x128xbf16>, vector<16x128xf32> -> vector<16x128xf32>
    %15 = arith.addf %10, %14 : vector<16x128xf32>
    %16 = vector.extract_strided_slice %4 {offsets = [2, 0], sizes = [16, 32], strides = [1, 1]} : vector<32x32xbf16> to vector<16x32xbf16>
    %c2 = arith.constant 2 : index
    %c0_12 = arith.constant 0 : index
    %c0_13 = arith.constant 0 : index
    %17 = vector.load %arg4[%c2, %c0_12, %c0_13] : memref<5x32x128xbf16, #tpu.memory_space<vmem>>, vector<1x32x128xbf16>
    %18 = vector.shape_cast %17 : vector<1x32x128xbf16> to vector<32x128xbf16>
    %cst_14 = arith.constant dense<0.000000e+00> : vector<16x128xf32>
    %19 = tpu.matmul %16, %18, %cst_14 {dimension_numbers = #tpu.dot_dimension_numbers<[1], [0], [0], [1], [0, 0, 1, 1], [], []>} : vector<16x32xbf16>, vector<32x128xbf16>, vector<16x128xf32> -> vector<16x128xf32>
    %20 = arith.addf %15, %19 : vector<16x128xf32>
    %21 = vector.extract_strided_slice %4 {offsets = [3, 0], sizes = [16, 32], strides = [1, 1]} : vector<32x32xbf16> to vector<16x32xbf16>
    %c3 = arith.constant 3 : index
    %c0_15 = arith.constant 0 : index
    %c0_16 = arith.constant 0 : index
    %22 = vector.load %arg4[%c3, %c0_15, %c0_16] : memref<5x32x128xbf16, #tpu.memory_space<vmem>>, vector<1x32x128xbf16>
    %23 = vector.shape_cast %22 : vector<1x32x128xbf16> to vector<32x128xbf16>
    %cst_17 = arith.constant dense<0.000000e+00> : vector<16x128xf32>
    %24 = tpu.matmul %21, %23, %cst_17 {dimension_numbers = #tpu.dot_dimension_numbers<[1], [0], [0], [1], [0, 0, 1, 1], [], []>} : vector<16x32xbf16>, vector<32x128xbf16>, vector<16x128xf32> -> vector<16x128xf32>
    %25 = arith.addf %20, %24 : vector<16x128xf32>
    %26 = vector.extract_strided_slice %4 {offsets = [4, 0], sizes = [16, 32], strides = [1, 1]} : vector<32x32xbf16> to vector<16x32xbf16>
    %c4 = arith.constant 4 : index
    %c0_18 = arith.constant 0 : index
    %c0_19 = arith.constant 0 : index
    %27 = vector.load %arg4[%c4, %c0_18, %c0_19] : memref<5x32x128xbf16, #tpu.memory_space<vmem>>, vector<1x32x128xbf16>
    %28 = vector.shape_cast %27 : vector<1x32x128xbf16> to vector<32x128xbf16>
    %cst_20 = arith.constant dense<0.000000e+00> : vector<16x128xf32>
    %29 = tpu.matmul %26, %28, %cst_20 {dimension_numbers = #tpu.dot_dimension_numbers<[1], [0], [0], [1], [0, 0, 1, 1], [], []>} : vector<16x32xbf16>, vector<32x128xbf16>, vector<16x128xf32> -> vector<16x128xf32>
    %30 = arith.addf %25, %29 : vector<16x128xf32>
    %cst_21 = arith.constant 0.000000e+00 : f32
    %31 = vector.broadcast %cst_21 : f32 to vector<16x128xf32>
    %32 = arith.maximumf %30, %31 : vector<16x128xf32>
    %c16_i32 = arith.constant 16 : i32
    %33 = arith.muli %arg1, %c16_i32 : i32
    %34 = tpu.iota {dimensions = array<i32: 0>} : vector<16x1xi32>
    %35 = vector.broadcast %33 : i32 to vector<16x1xi32>
    %36 = arith.addi %35, %34 : vector<16x1xi32>
    %c16_i32_22 = arith.constant 16 : i32
    %37 = vector.broadcast %c16_i32_22 : i32 to vector<16x1xi32>
    %38 = arith.cmpi slt, %36, %37 : vector<16x1xi32>
    %cst_23 = arith.constant 0.000000e+00 : f32
    %39 = vector.shape_cast %38 : vector<16x1xi1> to vector<16x1xi1>
    %40 = vector.broadcast %39 : vector<16x1xi1> to vector<16x128xi1>
    %41 = vector.broadcast %cst_23 : f32 to vector<16x128xf32>
    %42 = arith.select %40, %32, %41 : vector<16x128xi1>, vector<16x128xf32>
    %cst_24 = arith.constant dense<0.000000e+00> : vector<128xf32>
    %43 = vector.multi_reduction <add>, %42, %cst_24 [0] : vector<16x128xf32> to vector<128xf32>
    %44 = vector.shape_cast %43 : vector<128xf32> to vector<1x128xf32>
    %45 = arith.mulf %42, %42 : vector<16x128xf32>
    %cst_25 = arith.constant dense<0.000000e+00> : vector<128xf32>
    %46 = vector.multi_reduction <add>, %45, %cst_25 [0] : vector<16x128xf32> to vector<128xf32>
    %47 = vector.shape_cast %46 : vector<128xf32> to vector<1x128xf32>
    %48 = tpu.concatenate %44, %47 in 0 : vector<1x128xf32>, vector<1x128xf32> -> vector<2x128xf32>
    %c0_26 = arith.constant 0 : index
    %c0_27 = arith.constant 0 : index
    %c0_28 = arith.constant 0 : index
    %c0_29 = arith.constant 0 : index
    %49 = vector.load %arg5[%c0_26, %c0_27, %c0_28, %c0_29] : memref<1x1x2x128xf32, #tpu.memory_space<vmem>>, vector<1x1x2x128xf32>
    %50 = vector.shape_cast %49 : vector<1x1x2x128xf32> to vector<2x128xf32>
    %51 = vector.shape_cast %48 : vector<2x128xf32> to vector<1x1x2x128xf32>
    tpu.vector_store %arg5[%c0_26, %c0_27, %c0_28, %c0_29], %51 {strides = array<i32>} : memref<1x1x2x128xf32, #tpu.memory_space<vmem>>, vector<1x1x2x128xf32>,
    return
  }
  func.func @transform_0(%arg0: i32, %arg1: i32) -> (i32, i32, i32) {
    %c0_i32 = arith.constant 0 : i32
    %c0_i32_0 = arith.constant 0 : i32
    return %arg0, %arg1, %c0_i32 : i32, i32, i32
  }
  func.func @transform_1(%arg0: i32, %arg1: i32) -> (i32, i32, i32) {
    %c1_i32 = arith.constant 1 : i32
    %0 = arith.addi %arg1, %c1_i32 : i32
    %c0_i32 = arith.constant 0 : i32
    %c0_i32_0 = arith.constant 0 : i32
    return %arg0, %0, %c0_i32 : i32, i32, i32
  }
  func.func @transform_2(%arg0: i32, %arg1: i32) -> (i32, i32, i32) {
    %c0_i32 = arith.constant 0 : i32
    %c0_i32_0 = arith.constant 0 : i32
    %c0_i32_1 = arith.constant 0 : i32
    %c0_i32_2 = arith.constant 0 : i32
    return %c0_i32, %c0_i32_0, %c0_i32_1 : i32, i32, i32
  }
  func.func @transform_3(%arg0: i32, %arg1: i32) -> (i32, i32, i32, i32) {
    %c0_i32 = arith.constant 0 : i32
    %c0_i32_0 = arith.constant 0 : i32
    %c0_i32_1 = arith.constant 0 : i32
    return %arg0, %arg1, %c0_i32, %c0_i32_0 : i32, i32, i32, i32
  }
}

</mosaic_0001>

<llo_original>
// kernel: tpu_custom_call.1
$region0: #{tpu_custom_call.1}
  #allocation0 [shape = 'u32[]', space=smem, size = 0x4, offset = 0x4, fixed_abs, tag = 'smem constant byte address 0x4 - core index']
  #allocation1 [shape = 'u32[144,128]{1,0:T(1,128)}', space=vmem, size = 0x12000, scoped, tag = 'internal scratch']
  %s0 = inlined_call_operand.hbm [shape: bf16[2,32,32], index: 0, kind: input, shape index: {}]
  %s1 = inlined_call_operand.hbm [shape: bf16[2,32,32], index: 1, kind: input, shape index: {}]
  %s2 = inlined_call_operand.hbm [shape: bf16[5,32,128], index: 2, kind: input, shape index: {}]
  %s3 = inlined_call_operand.hbm [shape: f32[2,1,2,128], index: 3, kind: output, shape index: {}]
  %s4 = sld [smem:[#allocation0]]
  $region57: #{tpu_custom_call.1} parent=0
    _
  %s6 = ssub.s32 1, %s4
  %s7 = scalar_select 0, %s6, %s4
  $region1: #{tpu_custom_call.1} parent=0
    #allocation2 [shape = 'u8[8192]{0}', space=vmem, size = 0x2000, scoped, tag = 'input window, operand 0']
    #allocation3 [shape = 's32[2]{0}', space=sflag, size = 0x8, scoped, tag = 'scoped memory for tpu_custom_call.1']
    #allocation4 [shape = 's32[2]{0}', space=sflag, size = 0x8, scoped, tag = 'scoped memory for tpu_custom_call.1']
    #allocation5 [shape = 'u8[8192]{0}', space=vmem, size = 0x2000, scoped, tag = 'input window, operand 1']
    #allocation6 [shape = 's32[2]{0}', space=sflag, size = 0x8, scoped, tag = 'scoped memory for tpu_custom_call.1']
    #allocation7 [shape = 'u8[40960]{0}', space=vmem, size = 0xa000, scoped, tag = 'input window, operand 2, single buffered']
    #allocation8 [shape = 'u8[2048]{0}', space=vmem, size = 0x800, scoped, tag = 'output window, operand 0']
    %8 = vsyncpa [#allocation3], 0
    %s9 = scalar_lea.sflag [#allocation3], 1
    %10 = vsyncpa %s9, 0
    %11 = vsyncpa [#allocation6], 0
    %s12 = scalar_lea.sflag [#allocation6], 1
    %13 = vsyncpa %s12, 0
    %14 = vsyncpa [#allocation4], 0
    %s15 = scalar_lea.sflag [#allocation4], 1
    %16 = vsyncpa %s15, 0
    loop: start=0, step=1, limit=4
    $region2: #{tpu_custom_call.1} parent=1 // loop_pre_header
      _
    $region3: #{tpu_custom_call.1} parent=1 // loop_header
      %s18 = sphi 0, %s22
      %p19 = scmp.ge.s32.totalorder %s18, 4
      %s25 = sphi 0, %s37
      %s26 = sphi 0, %s33
      %s27 = sphi 0, %s25
      %s28 = sphi 0, %s26
      %s29 = sphi 0, %s27
      %s30 = sphi 0, %s28
      %s42 = sphi 0, %s44
      %s45 = sphi 0, %s42
      %s46 = sphi 0, %s45
      %s62 = sphi 0, %s46
      %s72 = sphi 0, %s74
      %s75 = sphi 0, %s72
      %s76 = sphi 0, %s75
      %s92 = sphi 0, %s76
      %s96 = sphi 0, %s96
      %s98 = sphi 0, %s96
      %s99 = sphi 0, %s98
      %s113 = sphi 0, %s99
      %s121 = sphi 0, %s123
      %s124 = sphi 0, %s121
      %s125 = sphi 0, %s124
      %s141 = sphi 0, %s125
    $region4: #{tpu_custom_call.1} parent=1 // loop_header_branch
      %21 = sbr.rel (%p19) target = $region8
    $region5: #{tpu_custom_call.1} parent=1 // loop_body
      %s23 = ssub.s32 %s18, 1
      %s24 = ssub.s32 %s18, 2
      %s31 = sadd.s32 1, %s26
      %p32 = scmp.ge.s32.totalorder %s31, 1
      %s33 = scalar_select %p32, 0, %s31
      %s34 = sadd.s32 1, %s25
      %s35 = scalar_select %p32, %s34, %s25
      %p36 = scmp.ge.s32.totalorder %s35, 2
      %s37 = scalar_select %p36, 0, %s35
      %s38 = ssub.s32 %s25, %s37
      %s39 = ssub.s32 %s26, %s33
      %s40 = sor.u32 %s38, %s39
      %p41 = scmp.eq.s32.totalorder %s40, 0
      %s43 = sadd.s32 %s42, 1
      %s44 = scalar_select %p41, %s42, %s43
      %p47 = pneg %p41
      %p48 = scmp.eq.s32.totalorder %s18, 1
      %p49 = por %p47, %p48
      %p50 = scmp.ne.s32.totalorder %s42, %s45
      %p51 = scmp.eq.s32.totalorder %s18, 0
      %p52 = por %p50, %p51
      %p53 = scmp.ne.s32.totalorder %s42, %s45
      %p54 = scmp.eq.s32.totalorder %s23, 1
      %p55 = por %p53, %p54
      %p56 = scmp.ne.s32.totalorder %s45, %s46
      %p57 = scmp.eq.s32.totalorder %s23, 0
      %p58 = por %p56, %p57
      %p59 = scmp.ne.s32.totalorder %s45, %s46
      %p60 = scmp.eq.s32.totalorder %s24, 1
      %p61 = por %p59, %p60
      %p63 = scmp.ne.s32.totalorder %s46, %s62
      %p64 = scmp.eq.s32.totalorder %s24, 0
      %p65 = por %p63, %p64
      %s66 = sadd.s32 %s26, 1
      %s67 = sadd.s32 %s33, 1
      %s68 = ssub.s32 %s25, %s37
      %s69 = ssub.s32 %s66, %s67
      %s70 = sor.u32 %s68, %s69
      %p71 = scmp.eq.s32.totalorder %s70, 0
      %s73 = sadd.s32 %s72, 1
      %s74 = scalar_select %p71, %s72, %s73
      %p77 = pneg %p71
      %p78 = scmp.eq.s32.totalorder %s18, 1
      %p79 = por %p77, %p78
      %p80 = scmp.ne.s32.totalorder %s72, %s75
      %p81 = scmp.eq.s32.totalorder %s18, 0
      %p82 = por %p80, %p81
      %p83 = scmp.ne.s32.totalorder %s72, %s75
      %p84 = scmp.eq.s32.totalorder %s23, 1
      %p85 = por %p83, %p84
      %p86 = scmp.ne.s32.totalorder %s75, %s76
      %p87 = scmp.eq.s32.totalorder %s23, 0
      %p88 = por %p86, %p87
      %p89 = scmp.ne.s32.totalorder %s75, %s76
      %p90 = scmp.eq.s32.totalorder %s24, 1
      %p91 = por %p89, %p90
      %p93 = scmp.ne.s32.totalorder %s76, %s92
      %p94 = scmp.eq.s32.totalorder %s24, 0
      %p95 = por %p93, %p94
      %s97 = sadd.s32 %s96, 1
      %p100 = scmp.eq.s32.totalorder %s18, 1
      %p101 = scmp.ne.s32.totalorder %s96, %s98
      %p102 = scmp.eq.s32.totalorder %s18, 0
      %p103 = por %p101, %p102
      %p104 = scmp.ne.s32.totalorder %s96, %s98
      %p105 = scmp.eq.s32.totalorder %s23, 1
      %p106 = por %p104, %p105
      %p107 = scmp.ne.s32.totalorder %s98, %s99
      %p108 = scmp.eq.s32.totalorder %s23, 0
      %p109 = por %p107, %p108
      %p110 = scmp.ne.s32.totalorder %s98, %s99
      %p111 = scmp.eq.s32.totalorder %s24, 1
      %p112 = por %p110, %p111
      %p114 = scmp.ne.s32.totalorder %s99, %s113
      %p115 = scmp.eq.s32.totalorder %s24, 0
      %p116 = por %p114, %p115
      %s117 = ssub.s32 %s25, %s37
      %s118 = ssub.s32 %s26, %s33
      %s119 = sor.u32 %s117, %s118
      %p120 = scmp.eq.s32.totalorder %s119, 0
      %s122 = sadd.s32 %s121, 1
      %s123 = scalar_select %p120, %s121, %s122
      %p126 = pneg %p120
      %p127 = scmp.eq.s32.totalorder %s18, 1
      %p128 = por %p126, %p127
      %p129 = scmp.ne.s32.totalorder %s121, %s124
      %p130 = scmp.eq.s32.totalorder %s18, 0
      %p131 = por %p129, %p130
      %p132 = scmp.ne.s32.totalorder %s121, %s124
      %p133 = scmp.eq.s32.totalorder %s23, 1
      %p134 = por %p132, %p133
      %p135 = scmp.ne.s32.totalorder %s124, %s125
      %p136 = scmp.eq.s32.totalorder %s23, 0
      %p137 = por %p135, %p136
      %p138 = scmp.ne.s32.totalorder %s124, %s125
      %p139 = scmp.eq.s32.totalorder %s24, 1
      %p140 = por %p138, %p139
      %p142 = scmp.ne.s32.totalorder %s125, %s141
      %p143 = scmp.eq.s32.totalorder %s24, 0
      %p144 = por %p142, %p143
      %p145 = scmp.le.s32.totalorder 1, %s18
      %p146 = scmp.lt.s32.totalorder %s18, 3
      %p147 = pnand %p145, %p146
      %p148 = pneg %p147
      // Predicated region
      $region9: #{tpu_custom_call.1} parent=5 // pred_check
        _
      $region10: #{tpu_custom_call.1} parent=5 // pred_check_branch
        %150 = sbr.rel (%p147) target = $region12
      $region11: #{tpu_custom_call.1} parent=5 // pred_region
        %s151 = ssub.s32 %s18, 1
        // Predicated region
        $region13: #{tpu_custom_call.1} parent=11 // pred_check
          %p152 = pneg %p109
        $region14: #{tpu_custom_call.1} parent=11 // pred_check_branch
          %154 = sbr.rel (%p152) target = $region16
        $region15: #{tpu_custom_call.1} parent=11 // pred_region
          %s156 = ssub.s32 1280, 1280
          %157 = vsyncadd [#allocation6], %s156
          %s158 = sshll.u32 [#allocation7], 4
          %s159 = int_to_ptr.vmem [resolvable:$true] %s158
          %164 = dma.hbm_to_vmem [thread:$0]  %s2, 1280, %s159, [#allocation6], 64, 64, 4
        $region16: #{tpu_custom_call.1} parent=11 // pred_fallthru
          _
      $region12: #{tpu_custom_call.1} parent=5 // pred_fallthru
        _
      %p165 = scmp.lt.s32.totalorder %s18, 2
      // Predicated region
      $region17: #{tpu_custom_call.1} parent=5 // pred_check
        %p166 = pneg %p165
      $region18: #{tpu_custom_call.1} parent=5 // pred_check_branch
        %168 = sbr.rel (%p166) target = $region20
      $region19: #{tpu_custom_call.1} parent=5 // pred_region
        // Predicated region
        $region21: #{tpu_custom_call.1} parent=19 // pred_check
          %p169 = pneg %p52
        $region22: #{tpu_custom_call.1} parent=19 // pred_check_branch
          %171 = sbr.rel (%p169) target = $region24
        $region23: #{tpu_custom_call.1} parent=19 // pred_region
          %s172 = sand.u32 %s42, 1
          %s173 = scalar_lea.sflag [#allocation3], %s172
          %s174 = sand.u32 %s42, 1
          %s175 = smul.addr %s174, 8
          %s176 = scalar_lea.vmem [#allocation2], %s175
          %s177 = smul.u32 2, %s26
          %s179 = ssub.s32 128, 128
          %180 = vsyncadd %s173, %s179
          %s181 = smul.addr %s25, 4
          %s182 = sadd.s32 %s177, %s181
          %s183 = smul.addr %s182, 64
          %s184 = scalar_lea.hbm %s0, %s183
          %s185 = sshll.u32 %s176, 4
          %s186 = int_to_ptr.vmem [resolvable:$true] %s185
          %191 = dma.hbm_to_vmem [thread:$0]  %s184, 128, %s186, %s173, 64, 64, 4
        $region24: #{tpu_custom_call.1} parent=19 // pred_fallthru
          _
        // Predicated region
        $region25: #{tpu_custom_call.1} parent=19 // pred_check
          %p192 = pneg %p82
        $region26: #{tpu_custom_call.1} parent=19 // pred_check_branch
          %194 = sbr.rel (%p192) target = $region28
        $region27: #{tpu_custom_call.1} parent=19 // pred_region
          %s195 = sand.u32 %s18, 1
          %s196 = scalar_lea.sflag [#allocation6], %s195
          %s197 = sand.u32 %s72, 1
          %s198 = smul.addr %s197, 8
          %s199 = scalar_lea.vmem [#allocation5], %s198
          %s200 = sadd.s32 %s26, 1
          %s201 = smul.u32 2, %s200
          %s203 = ssub.s32 128, 128
          %204 = vsyncadd %s196, %s203
          %s205 = smul.addr %s25, 4
          %s206 = sadd.s32 %s201, %s205
          %s207 = smul.addr %s206, 64
          %s208 = scalar_lea.hbm %s1, %s207
          %s209 = sshll.u32 %s199, 4
          %s210 = int_to_ptr.vmem [resolvable:$true] %s209
          %215 = dma.hbm_to_vmem [thread:$0]  %s208, 128, %s210, %s196, 64, 64, 4
        $region28: #{tpu_custom_call.1} parent=19 // pred_fallthru
          _
      $region20: #{tpu_custom_call.1} parent=5 // pred_fallthru
        _
      %p216 = scmp.le.s32.totalorder 1, %s18
      %p217 = scmp.lt.s32.totalorder %s18, 3
      %p218 = pnand %p216, %p217
      %p219 = pneg %p218
      // Predicated region
      $region29: #{tpu_custom_call.1} parent=5 // pred_check
        _
      $region30: #{tpu_custom_call.1} parent=5 // pred_check_branch
        %221 = sbr.rel (%p218) target = $region32
      $region31: #{tpu_custom_call.1} parent=5 // pred_region
        %s222 = ssub.s32 %s18, 1
        %s223 = sand.u32 %s45, 1
        %s224 = scalar_lea.sflag [#allocation3], %s223
        %s225 = sand.u32 %s45, 1
        %s226 = smul.addr %s225, 8
        %s227 = scalar_lea.vmem [#allocation2], %s226
        // Predicated region
        $region33: #{tpu_custom_call.1} parent=31 // pred_check
          %p228 = pneg %p58
        $region34: #{tpu_custom_call.1} parent=31 // pred_check_branch
          %230 = sbr.rel (%p228) target = $region36
        $region35: #{tpu_custom_call.1} parent=31 // pred_region
          %231 = dma.done %s224, 128
        $region36: #{tpu_custom_call.1} parent=31 // pred_fallthru
          _
        %s232 = sand.u32 %s23, 1
        %s233 = scalar_lea.sflag [#allocation6], %s232
        %s234 = sand.u32 %s75, 1
        %s235 = smul.addr %s234, 8
        %s236 = scalar_lea.vmem [#allocation5], %s235
        // Predicated region
        $region37: #{tpu_custom_call.1} parent=31 // pred_check
          %p237 = pneg %p88
        $region38: #{tpu_custom_call.1} parent=31 // pred_check_branch
          %239 = sbr.rel (%p237) target = $region40
        $region39: #{tpu_custom_call.1} parent=31 // pred_region
          %240 = dma.done %s233, 128
        $region40: #{tpu_custom_call.1} parent=31 // pred_fallthru
          _
        // Predicated region
        $region41: #{tpu_custom_call.1} parent=31 // pred_check
          %p241 = pneg %p109
        $region42: #{tpu_custom_call.1} parent=31 // pred_check_branch
          %243 = sbr.rel (%p241) target = $region44
        $region43: #{tpu_custom_call.1} parent=31 // pred_region
          %244 = dma.done [#allocation6], 1280
        $region44: #{tpu_custom_call.1} parent=31 // pred_fallthru
          _
        %s245 = sand.u32 %s45, 1
        %s246 = scalar_lea.sflag [#allocation3], %s245
        %s247 = sand.u32 %s45, 1
        %s248 = smul.addr %s247, 8
        %s249 = scalar_lea.vmem [#allocation2], %s248
        %p250 = pneg %p58
        %p251 = pneg %p55
        %s252 = sand.u32 %s23, 1
        %s253 = scalar_lea.sflag [#allocation6], %s252
        %s254 = sand.u32 %s75, 1
        %s255 = smul.addr %s254, 8
        %s256 = scalar_lea.vmem [#allocation5], %s255
        %p257 = pneg %p88
        %p258 = pneg %p85
        %p259 = pneg %p109
        %p260 = pneg %p106
        %p261 = pneg %p137
        %p262 = pneg %p134
        %s263 = sand.u32 %s124, 1
        %s264 = scalar_lea.sflag [#allocation4], %s263
        %s265 = sand.u32 %s124, 1
        %s266 = smul.addr %s265, 2
        %s267 = scalar_lea.vmem [#allocation8], %s266
        %s268 = smul.u32 2, %s28
        %s269 = sadd.s32 %s28, 1
        %s270 = smul.u32 2, %s269
        %v272 = vld [vmem:[%s227] sm:$0xf]
        %v273 = vld [vmem:[%s227 + $0x4] sm:$0xf]
        %v274 = vld [vmem:[%s236] sm:$0xf]
        %v275 = vld [vmem:[%s236 + $0x4] sm:$0xf]
        %v278 = vunpack.c.l.b16 %v272
        %v279 = vunpack.c.l.b16 %v273
        %v280 = vpack.c.b16 %v279, %v278
        %v283 = vunpack.c.l.b16 %v274
        %v284 = vunpack.c.l.b16 %v275
        %v285 = vpack.c.b16 %v284, %v283
        %v286 = vld [vmem:[#allocation7] sm:$0xf]
        %v287 = vld [vmem:[#allocation7 + $0x4] sm:$0xf]
        %v288 = vld [vmem:[#allocation7 + $0x8] sm:$0xf]
        %v289 = vld [vmem:[#allocation7 + $0xc] sm:$0xf]
        %s290 = scalar_lea.vmem [#allocation7], 16
        %v291 = vld [vmem:[%s290] sm:$0xf]
        %v292 = vld [vmem:[%s290 + $0x4] sm:$0xf]
        %v293 = vld [vmem:[%s290 + $0x8] sm:$0xf]
        %v294 = vld [vmem:[%s290 + $0xc] sm:$0xf]
        %vm295 = vsmask.f32 7424
        %v297 = vshrl.u32 %v280, 16
        %v299 = vshll.u32 %v280, 16
        %v301 = vrot.slane %v299, 1
        %v302 = vor.u32 %v297, %v301
        %v304 = vshll.u32 %v285, 16
        %v306 = vrot.slane %v304, 1
        %v307 = vsel %vm295, %v302, %v306
        %v312 = vunpack.c.l.b16 %v291
        %v313 = vunpack.c.l.b16 %v292
        %v314 = vunpack.c.l.b16 %v293
        %v315 = vunpack.c.l.b16 %v294
        %v316 = vpack.c.b16 %v313, %v312
        %v317 = vpack.c.b16 %v315, %v314
        %vm320 = vcmask 261120
        %v322 = vsel %vm320, %v307, 0
        %324 = vmatprep.subr.bf16.mxu0 0
        %325 = vmatpush1.bf16.msra.mxu0 %v316
        %326 = vmatprep.subr.bf16.mxu0 0
        %327 = vmatpush1.bf16.msra.mxu0 %v317
        %328 = vmatprep.subr.bf16.mxu0 0
        %329 = vmatpush1.bf16.msra.mxu0 0
        %330 = vmatprep.subr.bf16.mxu0 0
        %331 = vmatpush1.bf16.msra.mxu0 0
        %332 = vmatprep.subr.bf16.mxu0 0
        %333 = vmatpush1.bf16.msra.mxu0 0
        %334 = vmatprep.subr.bf16.mxu0 0
        %335 = vmatpush1.bf16.msra.mxu0 0
        %336 = vmatprep.subr.bf16.mxu0 0
        %337 = vmatpush1.bf16.msra.mxu0 0
        %338 = vmatprep.subr.bf16.mxu0 0
        %339 = vmatpush1.bf16.msra.mxu0 0
        %340 = vmatprep.subr.bf16.mxu0 0
        %341 = vmatpush1.bf16.msra.mxu0 0
        %342 = vmatprep.subr.bf16.mxu0 0
        %343 = vmatpush1.bf16.msra.mxu0 0
        %344 = vmatprep.subr.bf16.mxu0 0
        %345 = vmatpush1.bf16.msra.mxu0 0
        %346 = vmatprep.subr.bf16.mxu0 0
        %347 = vmatpush1.bf16.msra.mxu0 0
        %348 = vmatprep.subr.bf16.mxu0 0
        %349 = vmatpush1.bf16.msra.mxu0 0
        %350 = vmatprep.subr.bf16.mxu0 0
        %351 = vmatpush1.bf16.msra.mxu0 0
        %352 = vmatprep.subr.bf16.mxu0 0
        %353 = vmatpush1.bf16.msra.mxu0 0
        %354 = vmatprep.subr.bf16.mxu0 0
        %355 = vmatpush1.bf16.msra.mxu0 0
        %356 = vmatprep.mubr.bf16.mxu0 0
        %357 = vmatmul.mubr.bf16.gmra.mrb[0].mxu0 %v322
        %v358 = vpop.f32.mrb[0].mxu0
        %v359 = vadd.f32 0.0, %v358
        %v360 = vpop.f32.mrb[0].mxu0
        %v361 = vpop.f32.mrb[0].mxu0
        %v362 = vadd.f32 0.0, %v361
        %v363 = vpop.f32.mrb[0].mxu0
        %364 = vdwg.mxu0
        %v369 = vunpack.c.l.b16 %v286
        %v370 = vunpack.c.l.b16 %v287
        %v371 = vunpack.c.l.b16 %v288
        %v372 = vunpack.c.l.b16 %v289
        %v373 = vpack.c.b16 %v370, %v369
        %v374 = vpack.c.b16 %v372, %v371
        %v377 = vsel %vm320, %v280, 0
        %379 = vmatprep.subr.bf16.mxu0 0
        %380 = vmatpush1.bf16.msra.mxu0 %v373
        %381 = vmatprep.subr.bf16.mxu0 0
        %382 = vmatpush1.bf16.msra.mxu0 %v374
        %383 = vmatprep.subr.bf16.mxu0 0
        %384 = vmatpush1.bf16.msra.mxu0 0
        %385 = vmatprep.subr.bf16.mxu0 0
        %386 = vmatpush1.bf16.msra.mxu0 0
        %387 = vmatprep.subr.bf16.mxu0 0
        %388 = vmatpush1.bf16.msra.mxu0 0
        %389 = vmatprep.subr.bf16.mxu0 0
        %390 = vmatpush1.bf16.msra.mxu0 0
        %391 = vmatprep.subr.bf16.mxu0 0
        %392 = vmatpush1.bf16.msra.mxu0 0
        %393 = vmatprep.subr.bf16.mxu0 0
        %394 = vmatpush1.bf16.msra.mxu0 0
        %395 = vmatprep.subr.bf16.mxu0 0
        %396 = vmatpush1.bf16.msra.mxu0 0
        %397 = vmatprep.subr.bf16.mxu0 0
        %398 = vmatpush1.bf16.msra.mxu0 0
        %399 = vmatprep.subr.bf16.mxu0 0
        %400 = vmatpush1.bf16.msra.mxu0 0
        %401 = vmatprep.subr.bf16.mxu0 0
        %402 = vmatpush1.bf16.msra.mxu0 0
        %403 = vmatprep.subr.bf16.mxu0 0
        %404 = vmatpush1.bf16.msra.mxu0 0
        %405 = vmatprep.subr.bf16.mxu0 0
        %406 = vmatpush1.bf16.msra.mxu0 0
        %407 = vmatprep.subr.bf16.mxu0 0
        %408 = vmatpush1.bf16.msra.mxu0 0
        %409 = vmatprep.subr.bf16.mxu0 0
        %410 = vmatpush1.bf16.msra.mxu0 0
        %411 = vmatprep.mubr.bf16.mxu0 0
        %412 = vmatmul.mubr.bf16.gmra.mrb[0].mxu0 %v377
        %v413 = vpop.f32.mrb[0].mxu0
        %v414 = vadd.f32 %v359, %v413
        %v415 = vpop.f32.mrb[0].mxu0
        %v416 = vpop.f32.mrb[0].mxu0
        %v417 = vadd.f32 %v362, %v416
        %v418 = vpop.f32.mrb[0].mxu0
        %419 = vdwg.mxu0
        %s420 = scalar_lea.vmem [#allocation7], 32
        %v421 = vld [vmem:[%s420] sm:$0xf]
        %v422 = vld [vmem:[%s420 + $0x4] sm:$0xf]
        %v423 = vld [vmem:[%s420 + $0x8] sm:$0xf]
        %v424 = vld [vmem:[%s420 + $0xc] sm:$0xf]
        %vm425 = vcmask 1046528
        %v426 = vrot.slane %v280, 1
        %v427 = vrot.slane %v285, 1
        %v428 = vsel %vm425, %v426, %v427
        %v433 = vunpack.c.l.b16 %v421
        %v434 = vunpack.c.l.b16 %v422
        %v435 = vunpack.c.l.b16 %v423
        %v436 = vunpack.c.l.b16 %v424
        %v437 = vpack.c.b16 %v434, %v433
        %v438 = vpack.c.b16 %v436, %v435
        %v442 = vsel %vm320, %v428, 0
        %444 = vmatprep.subr.bf16.mxu0 0
        %445 = vmatpush1.bf16.msra.mxu0 %v437
        %446 = vmatprep.subr.bf16.mxu0 0
        %447 = vmatpush1.bf16.msra.mxu0 %v438
        %448 = vmatprep.subr.bf16.mxu0 0
        %449 = vmatpush1.bf16.msra.mxu0 0
        %450 = vmatprep.subr.bf16.mxu0 0
        %451 = vmatpush1.bf16.msra.mxu0 0
        %452 = vmatprep.subr.bf16.mxu0 0
        %453 = vmatpush1.bf16.msra.mxu0 0
        %454 = vmatprep.subr.bf16.mxu0 0
        %455 = vmatpush1.bf16.msra.mxu0 0
        %456 = vmatprep.subr.bf16.mxu0 0
        %457 = vmatpush1.bf16.msra.mxu0 0
        %458 = vmatprep.subr.bf16.mxu0 0
        %459 = vmatpush1.bf16.msra.mxu0 0
        %460 = vmatprep.subr.bf16.mxu0 0
        %461 = vmatpush1.bf16.msra.mxu0 0
        %462 = vmatprep.subr.bf16.mxu0 0
        %463 = vmatpush1.bf16.msra.mxu0 0
        %464 = vmatprep.subr.bf16.mxu0 0
        %465 = vmatpush1.bf16.msra.mxu0 0
        %466 = vmatprep.subr.bf16.mxu0 0
        %467 = vmatpush1.bf16.msra.mxu0 0
        %468 = vmatprep.subr.bf16.mxu0 0
        %469 = vmatpush1.bf16.msra.mxu0 0
        %470 = vmatprep.subr.bf16.mxu0 0
        %471 = vmatpush1.bf16.msra.mxu0 0
        %472 = vmatprep.subr.bf16.mxu0 0
        %473 = vmatpush1.bf16.msra.mxu0 0
        %474 = vmatprep.subr.bf16.mxu0 0
        %475 = vmatpush1.bf16.msra.mxu0 0
        %476 = vmatprep.mubr.bf16.mxu0 0
        %477 = vmatmul.mubr.bf16.gmra.mrb[0].mxu0 %v442
        %v478 = vpop.f32.mrb[0].mxu0
        %v479 = vadd.f32 0.0, %v478
        %v480 = vpop.f32.mrb[0].mxu0
        %v481 = vpop.f32.mrb[0].mxu0
        %v482 = vadd.f32 0.0, %v481
        %v483 = vpop.f32.mrb[0].mxu0
        %484 = vdwg.mxu0
        %v485 = vadd.f32 %v414, %v479
        %v486 = vadd.f32 %v417, %v482
        %s487 = scalar_lea.vmem [#allocation7], 48
        %v488 = vld [vmem:[%s487] sm:$0xf]
        %v489 = vld [vmem:[%s487 + $0x4] sm:$0xf]
        %v490 = vld [vmem:[%s487 + $0x8] sm:$0xf]
        %v491 = vld [vmem:[%s487 + $0xc] sm:$0xf]
        %vm492 = vsmask.f32 6400
        %v493 = vrot.slane %v297, 1
        %v494 = vrot.slane %v299, 2
        %v495 = vor.u32 %v493, %v494
        %v496 = vshrl.u32 %v285, 16
        %v498 = vrot.slane %v496, 1
        %v499 = vrot.slane %v304, 2
        %v500 = vor.u32 %v498, %v499
        %v501 = vsel %vm492, %v495, %v500
        %v506 = vunpack.c.l.b16 %v488
        %v507 = vunpack.c.l.b16 %v489
        %v508 = vunpack.c.l.b16 %v490
        %v509 = vunpack.c.l.b16 %v491
        %v510 = vpack.c.b16 %v507, %v506
        %v511 = vpack.c.b16 %v509, %v508
        %v515 = vsel %vm320, %v501, 0
        %517 = vmatprep.subr.bf16.mxu0 0
        %518 = vmatpush1.bf16.msra.mxu0 %v510
        %519 = vmatprep.subr.bf16.mxu0 0
        %520 = vmatpush1.bf16.msra.mxu0 %v511
        %521 = vmatprep.subr.bf16.mxu0 0
        %522 = vmatpush1.bf16.msra.mxu0 0
        %523 = vmatprep.subr.bf16.mxu0 0
        %524 = vmatpush1.bf16.msra.mxu0 0
        %525 = vmatprep.subr.bf16.mxu0 0
        %526 = vmatpush1.bf16.msra.mxu0 0
        %527 = vmatprep.subr.bf16.mxu0 0
        %528 = vmatpush1.bf16.msra.mxu0 0
        %529 = vmatprep.subr.bf16.mxu0 0
        %530 = vmatpush1.bf16.msra.mxu0 0
        %531 = vmatprep.subr.bf16.mxu0 0
        %532 = vmatpush1.bf16.msra.mxu0 0
        %533 = vmatprep.subr.bf16.mxu0 0
        %534 = vmatpush1.bf16.msra.mxu0 0
        %535 = vmatprep.subr.bf16.mxu0 0
        %536 = vmatpush1.bf16.msra.mxu0 0
        %537 = vmatprep.subr.bf16.mxu0 0
        %538 = vmatpush1.bf16.msra.mxu0 0
        %539 = vmatprep.subr.bf16.mxu0 0
        %540 = vmatpush1.bf16.msra.mxu0 0
        %541 = vmatprep.subr.bf16.mxu0 0
        %542 = vmatpush1.bf16.msra.mxu0 0
        %543 = vmatprep.subr.bf16.mxu0 0
        %544 = vmatpush1.bf16.msra.mxu0 0
        %545 = vmatprep.subr.bf16.mxu0 0
        %546 = vmatpush1.bf16.msra.mxu0 0
        %547 = vmatprep.subr.bf16.mxu0 0
        %548 = vmatpush1.bf16.msra.mxu0 0
        %549 = vmatprep.mubr.bf16.mxu0 0
        %550 = vmatmul.mubr.bf16.gmra.mrb[0].mxu0 %v515
        %v551 = vpop.f32.mrb[0].mxu0
        %v552 = vadd.f32 0.0, %v551
        %v553 = vpop.f32.mrb[0].mxu0
        %v554 = vpop.f32.mrb[0].mxu0
        %v555 = vadd.f32 0.0, %v554
        %v556 = vpop.f32.mrb[0].mxu0
        %557 = vdwg.mxu0
        %v558 = vadd.f32 %v485, %v552
        %v559 = vadd.f32 %v486, %v555
        %s560 = scalar_lea.vmem [#allocation7], 64
        %v561 = vld [vmem:[%s560] sm:$0xf]
        %v562 = vld [vmem:[%s560 + $0x4] sm:$0xf]
        %v563 = vld [vmem:[%s560 + $0x8] sm:$0xf]
        %v564 = vld [vmem:[%s560 + $0xc] sm:$0xf]
        %vm565 = vcmask 1045504
        %v566 = vrot.slane %v280, 2
        %v567 = vrot.slane %v285, 2
        %v568 = vsel %vm565, %v566, %v567
        %v573 = vunpack.c.l.b16 %v561
        %v574 = vunpack.c.l.b16 %v562
        %v575 = vunpack.c.l.b16 %v563
        %v576 = vunpack.c.l.b16 %v564
        %v577 = vpack.c.b16 %v574, %v573
        %v578 = vpack.c.b16 %v576, %v575
        %v582 = vsel %vm320, %v568, 0
        %584 = vmatprep.subr.bf16.mxu0 0
        %585 = vmatpush1.bf16.msra.mxu0 %v577
        %586 = vmatprep.subr.bf16.mxu0 0
        %587 = vmatpush1.bf16.msra.mxu0 %v578
        %588 = vmatprep.subr.bf16.mxu0 0
        %589 = vmatpush1.bf16.msra.mxu0 0
        %590 = vmatprep.subr.bf16.mxu0 0
        %591 = vmatpush1.bf16.msra.mxu0 0
        %592 = vmatprep.subr.bf16.mxu0 0
        %593 = vmatpush1.bf16.msra.mxu0 0
        %594 = vmatprep.subr.bf16.mxu0 0
        %595 = vmatpush1.bf16.msra.mxu0 0
        %596 = vmatprep.subr.bf16.mxu0 0
        %597 = vmatpush1.bf16.msra.mxu0 0
        %598 = vmatprep.subr.bf16.mxu0 0
        %599 = vmatpush1.bf16.msra.mxu0 0
        %600 = vmatprep.subr.bf16.mxu0 0
        %601 = vmatpush1.bf16.msra.mxu0 0
        %602 = vmatprep.subr.bf16.mxu0 0
        %603 = vmatpush1.bf16.msra.mxu0 0
        %604 = vmatprep.subr.bf16.mxu0 0
        %605 = vmatpush1.bf16.msra.mxu0 0
        %606 = vmatprep.subr.bf16.mxu0 0
        %607 = vmatpush1.bf16.msra.mxu0 0
        %608 = vmatprep.subr.bf16.mxu0 0
        %609 = vmatpush1.bf16.msra.mxu0 0
        %610 = vmatprep.subr.bf16.mxu0 0
        %611 = vmatpush1.bf16.msra.mxu0 0
        %612 = vmatprep.subr.bf16.mxu0 0
        %613 = vmatpush1.bf16.msra.mxu0 0
        %614 = vmatprep.subr.bf16.mxu0 0
        %615 = vmatpush1.bf16.msra.mxu0 0
        %616 = vmatprep.mubr.bf16.mxu0 0
        %617 = vmatmul.mubr.bf16.gmra.mrb[0].mxu0 %v582
        %v618 = vpop.f32.mrb[0].mxu0
        %v619 = vadd.f32 0.0, %v618
        %v620 = vpop.f32.mrb[0].mxu0
        %v621 = vpop.f32.mrb[0].mxu0
        %v622 = vadd.f32 0.0, %v621
        %v623 = vpop.f32.mrb[0].mxu0
        %624 = vdwg.mxu0
        %v625 = vadd.f32 %v558, %v619
        %v626 = vadd.f32 %v559, %v622
        %v627 = vmax.f32 %v625, 0.0
        %v628 = vmax.f32 %v626, 0.0
        %s629 = smul.u32 %s28, 16
        %v630 = vlaneseq
        %v631 = vshrl.u32 %v630, 7
        %v632 = vadd.s32 %v631, 8
        %v633 = vstv %s629
        %v634 = vadd.s32 %v633, %v631
        %v635 = vadd.s32 %v633, %v632
        %vm636 = vcmp.lt.s32.totalorder %v634, 16
        %vm637 = vcmp.lt.s32.totalorder %v635, 16
        %v638 = vsel %vm636, 1, 0
        %v639 = vsel %vm637, 1, 0
        %vm640 = vcmp.eq.s32.totalorder %v638, 1
        %vm641 = vcmp.eq.s32.totalorder %v639, 1
        %v642 = vsel %vm640, %v627, 0.0
        %v643 = vsel %vm641, %v628, 0.0
        %v644 = vadd.f32 %v642, %v643
        %v645 = vrot.slane %v644, 4
        %v646 = vadd.f32 %v644, %v645
        %v647 = vrot.slane %v646, 2
        %v648 = vadd.f32 %v646, %v647
        %v649 = vrot.slane %v648, 1
        %v650 = vadd.f32 %v648, %v649
        %v651 = vmul.f32 %v642, %v642
        %v652 = vmul.f32 %v643, %v643
        %v653 = vadd.f32 %v651, %v652
        %v654 = vrot.slane %v653, 4
        %v655 = vadd.f32 %v653, %v654
        %v656 = vrot.slane %v655, 2
        %v657 = vadd.f32 %v655, %v656
        %v658 = vrot.slane %v657, 1
        %v659 = vadd.f32 %v657, %v658
        %vm660 = vcmask 1040384
        %v661 = vsel %vm660, %v650, %v659
        %662 = vst [vmem:[%s267] sm:$0x3] %v661
        %s663 = sand.u32 %s124, 1
        %s664 = scalar_lea.sflag [#allocation4], %s663
        %s665 = sand.u32 %s124, 1
        %s666 = smul.addr %s665, 2
        %s667 = scalar_lea.vmem [#allocation8], %s666
        // Predicated region
        $region45: #{tpu_custom_call.1} parent=31 // pred_check
          %p668 = pneg %p134
        $region46: #{tpu_custom_call.1} parent=31 // pred_check_branch
          %670 = sbr.rel (%p668) target = $region48
        $region47: #{tpu_custom_call.1} parent=31 // pred_region
          %s672 = ssub.s32 32, 32
          %673 = vsyncadd %s664, %s672
          %s674 = sadd.s32 %s28, %s27
          %s675 = smul.addr %s674, 32
          %s676 = scalar_lea.hbm %s3, %s675
          %s678 = sshll.u32 %s667, 4
          %s679 = int_to_ptr.vmem [resolvable:$true] %s678
          %681 = dma.vmem_to_hbm [thread:$0]  %s679, 32, %s676, %s664
        $region48: #{tpu_custom_call.1} parent=31 // pred_fallthru
          _
      $region32: #{tpu_custom_call.1} parent=5 // pred_fallthru
        _
      %p682 = scmp.le.s32.totalorder 2, %s18
      // Predicated region
      $region49: #{tpu_custom_call.1} parent=5 // pred_check
        %p683 = pneg %p682
      $region50: #{tpu_custom_call.1} parent=5 // pred_check_branch
        %685 = sbr.rel (%p683) target = $region52
      $region51: #{tpu_custom_call.1} parent=5 // pred_region
        %s686 = ssub.s32 %s18, 2
        // Predicated region
        $region53: #{tpu_custom_call.1} parent=51 // pred_check
          %p687 = pneg %p140
        $region54: #{tpu_custom_call.1} parent=51 // pred_check_branch
          %689 = sbr.rel (%p687) target = $region56
        $region55: #{tpu_custom_call.1} parent=51 // pred_region
          %s690 = sand.u32 %s125, 1
          %s691 = scalar_lea.sflag [#allocation4], %s690
          %s692 = sand.u32 %s125, 1
          %s693 = smul.addr %s692, 2
          %s694 = scalar_lea.vmem [#allocation8], %s693
          %695 = dma.done %s691, 32
        $region56: #{tpu_custom_call.1} parent=51 // pred_fallthru
          _
      $region52: #{tpu_custom_call.1} parent=5 // pred_fallthru
        _
    $region6: #{tpu_custom_call.1} parent=1 // loop_footer
      %s22 = sadd.s32 1, %s18
    $region7: #{tpu_custom_call.1} parent=1 // loop_footer_branch
      %17 = sbr.rel target = $region3
    $region8: #{tpu_custom_call.1} parent=1 // loop_exit
      _
    %696 = vsyncpa [#allocation3], 1
    %s697 = scalar_lea.sflag [#allocation3], 1
    %698 = vsyncpa %s697, 1
    %699 = vsyncpa [#allocation6], 1
    %s700 = scalar_lea.sflag [#allocation6], 1
    %701 = vsyncpa %s700, 1
    %702 = vsyncpa [#allocation4], 1
    %s703 = scalar_lea.sflag [#allocation4], 1
    %704 = vsyncpa %s703, 1

</llo_original>
